<compile_context>
chip_gen: v5e
topology: v5e:2x2
jax: 0.10.0
libtpu: 0.0.40
codegen_flags: <defaults>
</compile_context>

<pallas_src>
import jax
import jax.numpy as jnp
from jax import lax
from jax.experimental import pallas as pl
from jax.experimental.pallas import tpu as pltpu

# --- small, TPU-friendly shapes consistent with the module ---
HIDDEN_DIM = 128          # hidden_dim
OUTPUT_DIM = 128          # vocabulary size (output_dim)
RNN_DIM = HIDDEN_DIM      # use_Bidirectional = False
ATTENTION_DKV = 64        # Attention_dkv
HEAD_N = 8                # MultiHead_Attention_N
ENC_LEN = 16              # encoder memory length (<= max_length)

H = HIDDEN_DIM
D = ATTENTION_DKV

# ---- packed operand layout (all segments 128-lane aligned) ----
# weight slab (H, W_COLS); every segment has in_features == H on the sublane axis
WQ_OFF = 0                      # (H, H)   [scale*Wq^T | 0]          applied to x
WKV_OFF = WQ_OFF + H            # (H, H)   [Wk^T | Wv^T]             applied to mem
WG_OFF = WKV_OFF + H            # (H, H)   constant head-grouping matrix G
WHH_OFF = WG_OFF + H            # (H, 3H)  Whh^T                     applied to h0
WCOMB_OFF = WHH_OFF + 3 * H     # (H, 3H)  [0 ; Wo^T @ Wih^T]        applied to feat
WOUT_OFF = WCOMB_OFF + 3 * H    # (H, H)   Wout^T                    applied to h_new
W_COLS = WOUT_OFF + H           # 1280

# bias slab (1, B_COLS)
BQ_OFF = 0                      # (H,)   [scale*bq | 0]
BKV_OFF = BQ_OFF + H            # (H,)   [bk | bv]
BHH_OFF = BKV_OFF + H           # (3H,)  bhh
BCOMB_OFF = BHH_OFF + 3 * H     # (3H,)  bo @ Wih^T + bih
BOUT_OFF = BCOMB_OFF + 3 * H    # (H,)   bout
B_COLS = BOUT_OFF + H           # 1152


def _decoder_kernel(x_ref, mem_ref, h0_ref, w_ref, b_ref, y_ref, h_ref):
    f32 = jnp.float32
    L = mem_ref.shape[0]

    x = x_ref[...]          # (1, H)   embedded + positionally-encoded token
    mem = mem_ref[...]      # (L, H)   encoder memory
    h0 = h0_ref[...]        # (1, H)   previous GRU hidden state

    # Q projection (attention scale + bq folded into the slab; lanes D..H-1 are zero)
    q = jnp.dot(x, w_ref[:, WQ_OFF:WQ_OFF + H],
                preferred_element_type=f32) + b_ref[:, BQ_OFF:BQ_OFF + H]          # (1, H)

    # Fused K|V projection: one lane-dense (L, H) result, lanes [0,D)=K, [D,H)=V.
    kv = jnp.dot(mem, w_ref[:, WKV_OFF:WKV_OFF + H],
                 preferred_element_type=f32) + b_ref[:, BKV_OFF:BKV_OFF + H]       # (L, H)

    # Per-head scores, replicated over every lane of that head (head of lane d is d % N).
    # NOTE: the PyTorch pad-mask adds pad_mask * sys.float_info.min which underflows to 0
    # in float32 -> no-op.  Softmax is monotone, so hard attention only needs the
    # (first-occurrence) argmax of the scores.
    s = jnp.dot(kv * q, w_ref[:, WG_OFF:WG_OFF + H], preferred_element_type=f32)   # (L, H)
    smax = jnp.max(s, axis=0, keepdims=True)
    l_iota = lax.broadcasted_iota(jnp.int32, (L, H), 0)
    first = jnp.min(jnp.where(s == smax, l_iota, L), axis=0, keepdims=True)        # (1, H)
    sel = (l_iota == first).astype(f32)                                            # one-hot over L
    feat = jnp.sum(sel * kv, axis=0, keepdims=True)     # (1, H); lanes [D,H) = hard-attn feature

    # GRU cell (num_layers=1, unidirectional, seq_len=1).  The attention output dense
    # (Wo) is pre-folded into W_ih; its zero rows discard the K half of `feat`.
    # PyTorch gate order: r, z, n.
    gi = jnp.dot(feat, w_ref[:, WCOMB_OFF:WCOMB_OFF + 3 * H],
                 preferred_element_type=f32) + b_ref[:, BCOMB_OFF:BCOMB_OFF + 3 * H]
    gh = jnp.dot(h0, w_ref[:, WHH_OFF:WHH_OFF + 3 * H],
                 preferred_element_type=f32) + b_ref[:, BHH_OFF:BHH_OFF + 3 * H]
    r = jax.nn.sigmoid(gi[:, 0:H] + gh[:, 0:H])
    z = jax.nn.sigmoid(gi[:, H:2 * H] + gh[:, H:2 * H])
    n = jnp.tanh(gi[:, 2 * H:3 * H] + r * gh[:, 2 * H:3 * H])
    hnew = (1.0 - z) * n + z * h0
    h_ref[...] = hnew

    # Output projection + softmax over the vocabulary (reciprocal on the EUP slot).
    logits = jnp.dot(hnew, w_ref[:, WOUT_OFF:WOUT_OFF + H],
                     preferred_element_type=f32) + b_ref[:, BOUT_OFF:BOUT_OFF + H]
    m = jnp.max(logits, axis=-1, keepdims=True)
    e = jnp.exp(logits - m)
    y_ref[...] = e * pl.reciprocal(jnp.sum(e, axis=-1, keepdims=True), approx=True)


def pack_params(p):
    """One-time host-side constant folding + slab packing."""
    f32 = jnp.float32
    scale = (D // HEAD_N) ** -0.5

    wq_pad = jnp.concatenate(
        [scale * p["Wq"].T, jnp.zeros((H, H - D), f32)], axis=1)                 # (H, H)
    wkv = jnp.concatenate([p["Wk"].T, p["Wv"].T], axis=1)                        # (H, H)
    d_idx = jnp.arange(H)[:, None]
    e_idx = jnp.arange(H)[None, :]
    G = ((d_idx < D) & ((d_idx % HEAD_N) == (e_idx % HEAD_N))).astype(f32)       # (H, H)
    whh = p["Whh"].T                                                             # (H, 3H)
    wcomb = jnp.concatenate(
        [jnp.zeros((H - D, 3 * H), f32), p["Wo"].T @ p["Wih"].T], axis=0)        # (H, 3H)
    wout = p["Wout"].T                                                           # (H, H)
    w_slab = jnp.concatenate([wq_pad, wkv, G, whh, wcomb, wout], axis=1)         # (H, 1280)

    bq_pad = jnp.concatenate([scale * p["bq"], jnp.zeros((H - D,), f32)])
    bkv = jnp.concatenate([p["bk"], p["bv"]])
    bcomb = p["bo"] @ p["Wih"].T + p["bih"]
    b_slab = jnp.concatenate([bq_pad, bkv, p["bhh"], bcomb, p["bout"]])[None, :]  # (1, 1152)

    return dict(emb=p["emb"], w=w_slab, b=b_slab)


def decoder_forward(x_tok, hidden, memory_encoder, memory_decoder, packed):
    V = OUTPUT_DIM

    # Glue: embedding lookup + dropout (eval = identity) + positional encoding.
    # Single token at decode position 0: sin(0)=0 on even dims, cos(0)=1 on odd dims.
    emb = packed["emb"][x_tok].reshape(1, H)
    pos = (jnp.arange(H) % 2).astype(jnp.float32)[None, :]
    x_emb = emb + pos

    # memory_decoder is embedded / positionally encoded in the reference but is only used
    # by the self-attention path (use_Self_Attention=False) -> it does not affect outputs.
    del memory_decoder

    mem = memory_encoder
    if mem.ndim > 2:          # Attention does memory = memory[0] when ndim > 2
        mem = mem[0]
    h0 = hidden.reshape(1, H).astype(jnp.float32)

    vmem = pl.BlockSpec(memory_space=pltpu.MemorySpace.VMEM)
    y, hnew = pl.pallas_call(
        _decoder_kernel,
        out_shape=(jax.ShapeDtypeStruct((1, V), jnp.float32),
                   jax.ShapeDtypeStruct((1, H), jnp.float32)),
        in_specs=[vmem] * 5,
        out_specs=(vmem, vmem),
        input_output_aliases={2: 1},   # update the recurrent hidden state in place
    )(x_emb, mem, h0, packed["w"], packed["b"])
    return y, hnew.reshape(1, 1, H), None


def init_params(key):
    V = OUTPUT_DIM
    ks = jax.random.split(key, 15)

    def nrm(k, shape, scale=0.1):
        return (scale * jax.random.normal(k, shape)).astype(jnp.float32)

    return dict(
        emb=nrm(ks[0], (V, H)),
        Wq=nrm(ks[1], (D, H)), bq=nrm(ks[2], (D,)),
        Wk=nrm(ks[3], (D, RNN_DIM)), bk=nrm(ks[4], (D,)),
        Wv=nrm(ks[5], (D, RNN_DIM)), bv=nrm(ks[6], (D,)),
        Wo=nrm(ks[7], (H, D)), bo=nrm(ks[8], (H,)),
        Wih=nrm(ks[9], (3 * H, H)), bih=nrm(ks[10], (3 * H,)),
        Whh=nrm(ks[11], (3 * H, H)), bhh=nrm(ks[12], (3 * H,)),
        Wout=nrm(ks[13], (V, RNN_DIM)), bout=nrm(ks[14], (V,)),
    )


def reference_forward(x_tok, hidden, memory_encoder, params):
    """Pure-JAX reference mirroring the PyTorch head-reshape/permute structure."""
    V, N = OUTPUT_DIM, HEAD_N
    x = params["emb"][x_tok] + (jnp.arange(H) % 2).astype(jnp.float32)
    mem = memory_encoder if memory_encoder.ndim <= 2 else memory_encoder[0]
    q = x @ params["Wq"].T + params["bq"]
    k = mem @ params["Wk"].T + params["bk"]
    v = mem @ params["Wv"].T + params["bv"]
    qh = (q * (D // N) ** -0.5).reshape(D // N, N)
    kh = k.reshape(-1, D // N, N)
    scores = jnp.einsum("ih,lih->hl", qh, kh)          # (N, L)
    idx = jnp.argmax(scores, axis=-1)                  # (N,)
    d = jnp.arange(D)
    feat = v[idx[d % N], d]                            # hard-attention feature (D,)
    attn = feat @ params["Wo"].T + params["bo"]
    h0 = hidden.reshape(H)
    gi = attn @ params["Wih"].T + params["bih"]
    gh = h0 @ params["Whh"].T + params["bhh"]
    r = jax.nn.sigmoid(gi[0:H] + gh[0:H])
    z = jax.nn.sigmoid(gi[H:2 * H] + gh[H:2 * H])
    n = jnp.tanh(gi[2 * H:3 * H] + r * gh[2 * H:3 * H])
    hnew = (1.0 - z) * n + z * h0
    y = jax.nn.softmax(hnew @ params["Wout"].T + params["bout"])
    return y[None, :], hnew[None, None, :]


if __name__ == "__main__":
    key = jax.random.PRNGKey(0)
    pkey, mkey, hkey = jax.random.split(key, 3)
    params = init_params(pkey)
    packed = pack_params(params)

    x_tok = jnp.array(3, dtype=jnp.int32)                                        # decoder input token
    hidden = (0.1 * jax.random.normal(hkey, (1, 1, HIDDEN_DIM))).astype(jnp.float32)
    memory_encoder = (0.5 * jax.random.normal(mkey, (ENC_LEN, RNN_DIM))).astype(jnp.float32)
    memory_decoder = (jnp.arange(6, dtype=jnp.int32) % OUTPUT_DIM)[None, :]      # unused by compute

    # Reference first (the kernel call donates its h0 buffer via input_output_aliases).
    y_ref, h_ref = reference_forward(x_tok, hidden, memory_encoder, params)

    y, hnew, _ = decoder_forward(x_tok, hidden, memory_encoder, memory_decoder, packed)
    jax.block_until_ready((y, hnew))

    # Tolerances loosened slightly vs. a bit-exact check: host-side algebraic folds
    # (scale->Wq, Wo->Wih) and the EUP approximate reciprocal change rounding.
    assert jnp.allclose(y, y_ref, atol=1e-4), float(jnp.max(jnp.abs(y - y_ref)))
    assert jnp.allclose(hnew, h_ref, atol=1e-4), float(jnp.max(jnp.abs(hnew - h_ref)))
    print("KERNEL_OK")
</pallas_src>

<mosaic_0001>
module attributes {stable_mosaic.version = 11 : i64} {
  func.func @_decoder_kernel(%arg0: memref<1x128xf32, #tpu.memory_space<vmem>>, %arg1: memref<16x128xf32, #tpu.memory_space<vmem>>, %arg2: memref<1x128xf32, #tpu.memory_space<vmem>>, %arg3: memref<128x1280xf32, #tpu.memory_space<vmem>>, %arg4: memref<1x1152xf32, #tpu.memory_space<vmem>>, %arg5: memref<1x128xf32, #tpu.memory_space<vmem>>, %arg6: memref<1x128xf32, #tpu.memory_space<vmem>>) attributes {dimension_semantics = [], scalar_prefetch = 0 : i64, scratch_operands = 0 : i64, tpu.core_type = #tpu.core_type<tc>} {
    %c0 = arith.constant 0 : index
    %c0_0 = arith.constant 0 : index
    %0 = vector.load %arg0[%c0, %c0_0] : memref<1x128xf32, #tpu.memory_space<vmem>>, vector<1x128xf32>
    %c0_1 = arith.constant 0 : index
    %c0_2 = arith.constant 0 : index
    %1 = vector.load %arg1[%c0_1, %c0_2] : memref<16x128xf32, #tpu.memory_space<vmem>>, vector<16x128xf32>
    %c0_3 = arith.constant 0 : index
    %c0_4 = arith.constant 0 : index
    %2 = vector.load %arg2[%c0_3, %c0_4] : memref<1x128xf32, #tpu.memory_space<vmem>>, vector<1x128xf32>
    %c0_5 = arith.constant 0 : index
    %c0_6 = arith.constant 0 : index
    %3 = vector.load %arg3[%c0_5, %c0_6] : memref<128x1280xf32, #tpu.memory_space<vmem>>, vector<128x128xf32>
    %cst = arith.constant dense<0.000000e+00> : vector<1x128xf32>
    %4 = tpu.matmul %0, %3, %cst {dimension_numbers = #tpu.dot_dimension_numbers<[1], [0], [0], [1], [0, 0, 1, 1], [], []>} : vector<1x128xf32>, vector<128x128xf32>, vector<1x128xf32> -> vector<1x128xf32>
    %c0_7 = arith.constant 0 : index
    %c0_8 = arith.constant 0 : index
    %5 = vector.load %arg4[%c0_7, %c0_8] : memref<1x1152xf32, #tpu.memory_space<vmem>>, vector<1x128xf32>
    %6 = arith.addf %4, %5 : vector<1x128xf32>
    %c0_9 = arith.constant 0 : index
    %c128 = arith.constant 128 : index
    %7 = vector.load %arg3[%c0_9, %c128] : memref<128x1280xf32, #tpu.memory_space<vmem>>, vector<128x128xf32>
    %cst_10 = arith.constant dense<0.000000e+00> : vector<16x128xf32>
    %8 = tpu.matmul %1, %7, %cst_10 {dimension_numbers = #tpu.dot_dimension_numbers<[1], [0], [0], [1], [0, 0, 1, 1], [], []>} : vector<16x128xf32>, vector<128x128xf32>, vector<16x128xf32> -> vector<16x128xf32>
    %c0_11 = arith.constant 0 : index
    %c128_12 = arith.constant 128 : index
    %9 = vector.load %arg4[%c0_11, %c128_12] : memref<1x1152xf32, #tpu.memory_space<vmem>>, vector<1x128xf32>
    %10 = vector.broadcast %9 : vector<1x128xf32> to vector<16x128xf32>
    %11 = arith.addf %8, %10 : vector<16x128xf32>
    %12 = vector.broadcast %6 : vector<1x128xf32> to vector<16x128xf32>
    %13 = arith.mulf %11, %12 : vector<16x128xf32>
    %c0_13 = arith.constant 0 : index
    %c256 = arith.constant 256 : index
    %14 = vector.load %arg3[%c0_13, %c256] : memref<128x1280xf32, #tpu.memory_space<vmem>>, vector<128x128xf32>
    %cst_14 = arith.constant dense<0.000000e+00> : vector<16x128xf32>
    %15 = tpu.matmul %13, %14, %cst_14 {dimension_numbers = #tpu.dot_dimension_numbers<[1], [0], [0], [1], [0, 0, 1, 1], [], []>} : vector<16x128xf32>, vector<128x128xf32>, vector<16x128xf32> -> vector<16x128xf32>
    %cst_15 = arith.constant dense<0xFF800000> : vector<128xf32>
    %16 = vector.multi_reduction <maximumf>, %15, %cst_15 [0] : vector<16x128xf32> to vector<128xf32>
    %17 = vector.shape_cast %16 : vector<128xf32> to vector<1x128xf32>
    %18 = tpu.iota {dimensions = array<i32: 0>} : vector<16x128xi32>
    %19 = vector.broadcast %17 : vector<1x128xf32> to vector<16x128xf32>
    %20 = arith.cmpf oeq, %15, %19 : vector<16x128xf32>
    %c16_i32 = arith.constant 16 : i32
    %21 = vector.broadcast %c16_i32 : i32 to vector<16x128xi32>
    %22 = arith.select %20, %18, %21 : vector<16x128xi1>, vector<16x128xi32>
    %cst_16 = arith.constant dense<2147483647> : vector<128xi32>
    %23 = vector.multi_reduction <minsi>, %22, %cst_16 [0] : vector<16x128xi32> to vector<128xi32>
    %24 = vector.shape_cast %23 : vector<128xi32> to vector<1x128xi32>
    %25 = vector.broadcast %24 : vector<1x128xi32> to vector<16x128xi32>
    %26 = arith.cmpi eq, %18, %25 : vector<16x128xi32>
    %27 = arith.extui %26 : vector<16x128xi1> to vector<16x128xi32>
    %28 = arith.sitofp %27 : vector<16x128xi32> to vector<16x128xf32>
    %29 = arith.mulf %28, %11 : vector<16x128xf32>
    %cst_17 = arith.constant dense<0.000000e+00> : vector<128xf32>
    %30 = vector.multi_reduction <add>, %29, %cst_17 [0] : vector<16x128xf32> to vector<128xf32>
    %31 = vector.shape_cast %30 : vector<128xf32> to vector<1x128xf32>
    %c0_18 = arith.constant 0 : index
    %c768 = arith.constant 768 : index
    %32 = vector.load %arg3[%c0_18, %c768] : memref<128x1280xf32, #tpu.memory_space<vmem>>, vector<128x384xf32>
    %cst_19 = arith.constant dense<0.000000e+00> : vector<1x384xf32>
    %33 = tpu.matmul %31, %32, %cst_19 {dimension_numbers = #tpu.dot_dimension_numbers<[1], [0], [0], [1], [0, 0, 1, 1], [], []>} : vector<1x128xf32>, vector<128x384xf32>, vector<1x384xf32> -> vector<1x384xf32>
    %c0_20 = arith.constant 0 : index
    %c640 = arith.constant 640 : index
    %34 = vector.load %arg4[%c0_20, %c640] : memref<1x1152xf32, #tpu.memory_space<vmem>>, vector<1x384xf32>
    %35 = arith.addf %33, %34 : vector<1x384xf32>
    %c0_21 = arith.constant 0 : index
    %c384 = arith.constant 384 : index
    %36 = vector.load %arg3[%c0_21, %c384] : memref<128x1280xf32, #tpu.memory_space<vmem>>, vector<128x384xf32>
    %cst_22 = arith.constant dense<0.000000e+00> : vector<1x384xf32>
    %37 = tpu.matmul %2, %36, %cst_22 {dimension_numbers = #tpu.dot_dimension_numbers<[1], [0], [0], [1], [0, 0, 1, 1], [], []>} : vector<1x128xf32>, vector<128x384xf32>, vector<1x384xf32> -> vector<1x384xf32>
    %c0_23 = arith.constant 0 : index
    %c256_24 = arith.constant 256 : index
    %38 = vector.load %arg4[%c0_23, %c256_24] : memref<1x1152xf32, #tpu.memory_space<vmem>>, vector<1x384xf32>
    %39 = arith.addf %37, %38 : vector<1x384xf32>
    %40 = vector.extract_strided_slice %35 {offsets = [0, 0], sizes = [1, 128], strides = [1, 1]} : vector<1x384xf32> to vector<1x128xf32>
    %41 = vector.extract_strided_slice %39 {offsets = [0, 0], sizes = [1, 128], strides = [1, 1]} : vector<1x384xf32> to vector<1x128xf32>
    %42 = arith.addf %40, %41 : vector<1x128xf32>
    %43 = arith.negf %42 : vector<1x128xf32>
    %44 = math.exp %43 : vector<1x128xf32>
    %cst_25 = arith.constant 1.000000e+00 : f32
    %45 = vector.broadcast %cst_25 : f32 to vector<1x128xf32>
    %46 = arith.addf %45, %44 : vector<1x128xf32>
    %47 = arith.divf %45, %46 : vector<1x128xf32>
    %48 = vector.extract_strided_slice %35 {offsets = [0, 128], sizes = [1, 128], strides = [1, 1]} : vector<1x384xf32> to vector<1x128xf32>
    %49 = vector.extract_strided_slice %39 {offsets = [0, 128], sizes = [1, 128], strides = [1, 1]} : vector<1x384xf32> to vector<1x128xf32>
    %50 = arith.addf %48, %49 : vector<1x128xf32>
    %51 = arith.negf %50 : vector<1x128xf32>
    %52 = math.exp %51 : vector<1x128xf32>
    %cst_26 = arith.constant 1.000000e+00 : f32
    %53 = vector.broadcast %cst_26 : f32 to vector<1x128xf32>
    %54 = arith.addf %53, %52 : vector<1x128xf32>
    %55 = arith.divf %53, %54 : vector<1x128xf32>
    %56 = vector.extract_strided_slice %35 {offsets = [0, 256], sizes = [1, 128], strides = [1, 1]} : vector<1x384xf32> to vector<1x128xf32>
    %57 = vector.extract_strided_slice %39 {offsets = [0, 256], sizes = [1, 128], strides = [1, 1]} : vector<1x384xf32> to vector<1x128xf32>
    %58 = arith.mulf %47, %57 : vector<1x128xf32>
    %59 = arith.addf %56, %58 : vector<1x128xf32>
    %60 = math.tanh %59 : vector<1x128xf32>
    %cst_27 = arith.constant 1.000000e+00 : f32
    %61 = vector.broadcast %cst_27 : f32 to vector<1x128xf32>
    %62 = arith.subf %61, %55 : vector<1x128xf32>
    %63 = arith.mulf %62, %60 : vector<1x128xf32>
    %64 = arith.mulf %55, %2 : vector<1x128xf32>
    %65 = arith.addf %63, %64 : vector<1x128xf32>
    %c0_28 = arith.constant 0 : index
    %c0_29 = arith.constant 0 : index
    %66 = vector.load %arg6[%c0_28, %c0_29] : memref<1x128xf32, #tpu.memory_space<vmem>>, vector<1x128xf32>
    tpu.vector_store %arg6[%c0_28, %c0_29], %65 {strides = array<i32>} : memref<1x128xf32, #tpu.memory_space<vmem>>, vector<1x128xf32>,
    %c0_30 = arith.constant 0 : index
    %c1152 = arith.constant 1152 : index
    %67 = vector.load %arg3[%c0_30, %c1152] : memref<128x1280xf32, #tpu.memory_space<vmem>>, vector<128x128xf32>
    %cst_31 = arith.constant dense<0.000000e+00> : vector<1x128xf32>
    %68 = tpu.matmul %65, %67, %cst_31 {dimension_numbers = #tpu.dot_dimension_numbers<[1], [0], [0], [1], [0, 0, 1, 1], [], []>} : vector<1x128xf32>, vector<128x128xf32>, vector<1x128xf32> -> vector<1x128xf32>
    %c0_32 = arith.constant 0 : index
    %c1024 = arith.constant 1024 : index
    %69 = vector.load %arg4[%c0_32, %c1024] : memref<1x1152xf32, #tpu.memory_space<vmem>>, vector<1x128xf32>
    %70 = arith.addf %68, %69 : vector<1x128xf32>
    %cst_33 = arith.constant dense<0xFF800000> : vector<1xf32>
    %71 = vector.multi_reduction <maximumf>, %70, %cst_33 [1] : vector<1x128xf32> to vector<1xf32>
    %72 = vector.shape_cast %71 : vector<1xf32> to vector<1x1xf32>
    %73 = vector.broadcast %72 : vector<1x1xf32> to vector<1x128xf32>
    %74 = arith.subf %70, %73 : vector<1x128xf32>
    %75 = math.exp %74 : vector<1x128xf32>
    %cst_34 = arith.constant dense<0.000000e+00> : vector<1xf32>
    %76 = vector.multi_reduction <add>, %75, %cst_34 [1] : vector<1x128xf32> to vector<1xf32>
    %77 = vector.shape_cast %76 : vector<1xf32> to vector<1x1xf32>
    %78 = tpu.reciprocal %77 {approx = true} : vector<1x1xf32> -> vector<1x1xf32>
    %79 = vector.broadcast %78 : vector<1x1xf32> to vector<1x128xf32>
    %80 = arith.mulf %75, %79 : vector<1x128xf32>
    %c0_35 = arith.constant 0 : index
    %c0_36 = arith.constant 0 : index
    %81 = vector.load %arg5[%c0_35, %c0_36] : memref<1x128xf32, #tpu.memory_space<vmem>>, vector<1x128xf32>
    tpu.vector_store %arg5[%c0_35, %c0_36], %80 {strides = array<i32>} : memref<1x128xf32, #tpu.memory_space<vmem>>, vector<1x128xf32>,
    return
  }
}

</mosaic_0001>

<llo_original>
// kernel: tpu_custom_call.1
$region0: #{tpu_custom_call.1}
  #allocation0 [shape = 'u32[]', space=smem, size = 0x4, offset = 0x4, fixed_abs, tag = 'smem constant byte address 0x4 - core index']
  #allocation1 [shape = 'u32[72,128]{1,0:T(1,128)}', space=vmem, size = 0x9000, scoped, tag = 'internal scratch']
  %s0 = inlined_call_operand.vmem [shape: f32[1,128], index: 0, kind: input, shape index: {}]
  %s1 = inlined_call_operand.hbm [shape: f32[16,128], index: 1, kind: input, shape index: {}]
  %s2 = inlined_call_operand.hbm [shape: f32[1,128], index: 2, kind: input, shape index: {}, may-alias: {2,6}]
  %s3 = inlined_call_operand.hbm [shape: f32[128,1280], index: 3, kind: input, shape index: {}]
  %s4 = inlined_call_operand.hbm [shape: f32[1,1152], index: 4, kind: input, shape index: {}]
  %s5 = inlined_call_operand.hbm [shape: f32[1,128], index: 5, kind: output, shape index: {0}]
  %s6 = inlined_call_operand.hbm [shape: f32[1,128], index: 6, kind: output, shape index: {1}, may-alias: {2,6}]
  %7 = xla_tuple %s5, %s6
  %s8 = sld [smem:[#allocation0]]
  $region54: #{tpu_custom_call.1} parent=0
    _
  %s10 = ssub.s32 1, %s8
  %s11 = scalar_select 0, %s10, %s8
  $region1: #{tpu_custom_call.1} parent=0
    #allocation2 [shape = 'u8[8192]{0}', space=vmem, size = 0x2000, scoped, tag = 'input window, operand 1, single buffered']
    #allocation3 [shape = 's32[1]{0}', space=sflag, size = 0x4, scoped, tag = 'scoped memory for tpu_custom_call.1']
    #allocation4 [shape = 's32[1]{0}', space=sflag, size = 0x4, scoped, tag = 'scoped memory for tpu_custom_call.1']
    #allocation5 [shape = 'u8[512]{0}', space=vmem, size = 0x400, scoped, tag = 'input window, operand 2, single buffered']
    #allocation6 [shape = 's32[1]{0}', space=sflag, size = 0x4, scoped, tag = 'scoped memory for tpu_custom_call.1']
    #allocation7 [shape = 'u8[655360]{0}', space=vmem, size = 0xa0000, scoped, tag = 'input window, operand 3, single buffered']
    #allocation8 [shape = 'u8[4608]{0}', space=vmem, size = 0x1400, scoped, tag = 'input window, operand 4, single buffered']
    #allocation9 [shape = 's32[1]{0}', space=sflag, size = 0x4, scoped, tag = 'scoped memory for tpu_custom_call.1']
    #allocation10 [shape = 'u8[512]{0}', space=vmem, size = 0x400, scoped, tag = 'output window, operand 0, single buffered']
    #allocation11 [shape = 'u8[512]{0}', space=vmem, size = 0x400, scoped, tag = 'output window, operand 1, single buffered']
    #allocation12 [shape = 's32[1]{0}', space=sflag, size = 0x4, scoped, tag = 'scoped memory for tpu_custom_call.1']
    %12 = vsyncpa [#allocation3], 0
    %13 = vsyncpa [#allocation6], 0
    %14 = vsyncpa [#allocation9], 0
    %15 = vsyncpa [#allocation4], 0
    %16 = vsyncpa [#allocation12], 0
    // Predicated region
    $region2: #{tpu_custom_call.1} parent=1 // pred_check
      _
    $region3: #{tpu_custom_call.1} parent=1 // pred_check_branch
      %18 = sbr.rel (0) target = $region5
    $region4: #{tpu_custom_call.1} parent=1 // pred_region
      _
    $region5: #{tpu_custom_call.1} parent=1 // pred_fallthru
      _
    // Predicated region
    $region6: #{tpu_custom_call.1} parent=1 // pred_check
      _
    $region7: #{tpu_custom_call.1} parent=1 // pred_check_branch
      %20 = sbr.rel (0) target = $region9
    $region8: #{tpu_custom_call.1} parent=1 // pred_region
      %22 = vsyncadd [#allocation3], 0
      %s23 = sshll.u32 %s1, 4
      %s24 = int_to_ptr.hbm [resolvable:$true] %s23
      %s25 = sshll.u32 [#allocation2], 4
      %s26 = int_to_ptr.vmem [resolvable:$true] %s25
      %31 = dma.hbm_to_vmem [thread:$0]  %s24, 256, %s26, [#allocation3], 128, 128, 8
    $region9: #{tpu_custom_call.1} parent=1 // pred_fallthru
      _
    // Predicated region
    $region10: #{tpu_custom_call.1} parent=1 // pred_check
      _
    $region11: #{tpu_custom_call.1} parent=1 // pred_check_branch
      %33 = sbr.rel (0) target = $region13
    $region12: #{tpu_custom_call.1} parent=1 // pred_region
      %35 = vsyncadd [#allocation6], 0
      %s37 = sshll.u32 %s2, 4
      %s38 = int_to_ptr.hbm [resolvable:$true] %s37
      %s39 = sshll.u32 [#allocation5], 4
      %s40 = int_to_ptr.vmem [resolvable:$true] %s39
      %42 = dma.hbm_to_vmem [thread:$0]  %s38, 16, %s40, [#allocation6]
    $region13: #{tpu_custom_call.1} parent=1 // pred_fallthru
      _
    // Predicated region
    $region14: #{tpu_custom_call.1} parent=1 // pred_check
      _
    $region15: #{tpu_custom_call.1} parent=1 // pred_check_branch
      %44 = sbr.rel (0) target = $region17
    $region16: #{tpu_custom_call.1} parent=1 // pred_region
      %46 = vsyncadd [#allocation6], 0
      %s47 = sshll.u32 %s3, 4
      %s48 = int_to_ptr.hbm [resolvable:$true] %s47
      %s49 = sshll.u32 [#allocation7], 4
      %s50 = int_to_ptr.vmem [resolvable:$true] %s49
      %55 = dma.hbm_to_vmem [thread:$0]  %s48, 20480, %s50, [#allocation6], 1280, 1280, 80
    $region17: #{tpu_custom_call.1} parent=1 // pred_fallthru
      _
    // Predicated region
    $region18: #{tpu_custom_call.1} parent=1 // pred_check
      _
    $region19: #{tpu_custom_call.1} parent=1 // pred_check_branch
      %57 = sbr.rel (0) target = $region21
    $region20: #{tpu_custom_call.1} parent=1 // pred_region
      %59 = vsyncadd [#allocation9], 0
      %s61 = sshll.u32 %s4, 4
      %s62 = int_to_ptr.hbm [resolvable:$true] %s61
      %s63 = sshll.u32 [#allocation8], 4
      %s64 = int_to_ptr.vmem [resolvable:$true] %s63
      %66 = dma.hbm_to_vmem [thread:$0]  %s62, 144, %s64, [#allocation9]
    $region21: #{tpu_custom_call.1} parent=1 // pred_fallthru
      _
    // Predicated region
    $region22: #{tpu_custom_call.1} parent=1 // pred_check
      _
    $region23: #{tpu_custom_call.1} parent=1 // pred_check_branch
      %68 = sbr.rel (0) target = $region25
    $region24: #{tpu_custom_call.1} parent=1 // pred_region
      %70 = dma.done [#allocation3], 256
    $region25: #{tpu_custom_call.1} parent=1 // pred_fallthru
      _
    // Predicated region
    $region26: #{tpu_custom_call.1} parent=1 // pred_check
      _
    $region27: #{tpu_custom_call.1} parent=1 // pred_check_branch
      %72 = sbr.rel (0) target = $region29
    $region28: #{tpu_custom_call.1} parent=1 // pred_region
      %74 = dma.done [#allocation6], 16
    $region29: #{tpu_custom_call.1} parent=1 // pred_fallthru
      _
    // Predicated region
    $region30: #{tpu_custom_call.1} parent=1 // pred_check
      _
    $region31: #{tpu_custom_call.1} parent=1 // pred_check_branch
      %76 = sbr.rel (0) target = $region33
    $region32: #{tpu_custom_call.1} parent=1 // pred_region
      %78 = dma.done [#allocation6], 20480
    $region33: #{tpu_custom_call.1} parent=1 // pred_fallthru
      _
    // Predicated region
    $region34: #{tpu_custom_call.1} parent=1 // pred_check
      _
    $region35: #{tpu_custom_call.1} parent=1 // pred_check_branch
      %80 = sbr.rel (0) target = $region37
    $region36: #{tpu_custom_call.1} parent=1 // pred_region
      %82 = dma.done [#allocation9], 144
    $region37: #{tpu_custom_call.1} parent=1 // pred_fallthru
      _
    %v83 = vld [vmem:[%s0] sm:$0x1]
    %v84 = vld [vmem:[#allocation2] sm:$0xff]
    %v85 = vld [vmem:[#allocation2 + $0x8] sm:$0xff]
    %v86 = vld [vmem:[#allocation5] sm:$0x1]
    %v87 = vld [vmem:[#allocation7] sm:$0xff]
    %v88 = vld [vmem:[#allocation7 + $0x50] sm:$0xff]
    %v89 = vld [vmem:[#allocation7 + $0xa0] sm:$0xff]
    %v90 = vld [vmem:[#allocation7 + $0xf0] sm:$0xff]
    %v91 = vld [vmem:[#allocation7 + $0x140] sm:$0xff]
    %v92 = vld [vmem:[#allocation7 + $0x190] sm:$0xff]
    %v93 = vld [vmem:[#allocation7 + $0x1e0] sm:$0xff]
    %v94 = vld [vmem:[#allocation7 + $0x230] sm:$0xff]
    %v95 = vld [vmem:[#allocation7 + $0x280] sm:$0xff]
    %v96 = vld [vmem:[#allocation7 + $0x2d0] sm:$0xff]
    %v97 = vld [vmem:[#allocation7 + $0x320] sm:$0xff]
    %v98 = vld [vmem:[#allocation7 + $0x370] sm:$0xff]
    %v99 = vld [vmem:[#allocation7 + $0x3c0] sm:$0xff]
    %v100 = vld [vmem:[#allocation7 + $0x410] sm:$0xff]
    %v101 = vld [vmem:[#allocation7 + $0x460] sm:$0xff]
    %v102 = vld [vmem:[#allocation7 + $0x4b0] sm:$0xff]
    %v103 = vld [vmem:[#allocation8] sm:$0x1]
    %104 = vmatpush.msra.mxu0 %v102
    %105 = vmatpush.msra.mxu0 %v101
    %106 = vmatpush.msra.mxu0 %v100
    %107 = vmatpush.msra.mxu0 %v99
    %108 = vmatpush.msra.mxu0 %v98
    %109 = vmatpush.msra.mxu0 %v97
    %110 = vmatpush.msra.mxu0 %v96
    %111 = vmatpush.msra.mxu0 %v95
    %112 = vmatpush.msra.mxu0 %v94
    %113 = vmatpush.msra.mxu0 %v93
    %114 = vmatpush.msra.mxu0 %v92
    %115 = vmatpush.msra.mxu0 %v91
    %116 = vmatpush.msra.mxu0 %v90
    %117 = vmatpush.msra.mxu0 %v89
    %118 = vmatpush.msra.mxu0 %v88
    %119 = vmatpush.msra.mxu0 %v87
    %120 = vmatmul.f32.gmra.mxu0 %v83
    %v121 = vpop.f32.mrf.mxu0
    %v122 = vadd.f32 %v103, %v121
    %123 = vdwg.mxu0
    %v124 = vld [vmem:[#allocation7 + $0x8] sm:$0xff]
    %v125 = vld [vmem:[#allocation7 + $0x58] sm:$0xff]
    %v126 = vld [vmem:[#allocation7 + $0xa8] sm:$0xff]
    %v127 = vld [vmem:[#allocation7 + $0xf8] sm:$0xff]
    %v128 = vld [vmem:[#allocation7 + $0x148] sm:$0xff]
    %v129 = vld [vmem:[#allocation7 + $0x198] sm:$0xff]
    %v130 = vld [vmem:[#allocation7 + $0x1e8] sm:$0xff]
    %v131 = vld [vmem:[#allocation7 + $0x238] sm:$0xff]
    %v132 = vld [vmem:[#allocation7 + $0x288] sm:$0xff]
    %v133 = vld [vmem:[#allocation7 + $0x2d8] sm:$0xff]
    %v134 = vld [vmem:[#allocation7 + $0x328] sm:$0xff]
    %v135 = vld [vmem:[#allocation7 + $0x378] sm:$0xff]
    %v136 = vld [vmem:[#allocation7 + $0x3c8] sm:$0xff]
    %v137 = vld [vmem:[#allocation7 + $0x418] sm:$0xff]
    %v138 = vld [vmem:[#allocation7 + $0x468] sm:$0xff]
    %v139 = vld [vmem:[#allocation7 + $0x4b8] sm:$0xff]
    %v140 = vld [vmem:[#allocation8 + $0x1] sm:$0x1]
    %v142 = vperm.slane %v140, 0
    %144 = vmatpush.msra.mxu0 %v139
    %145 = vmatpush.msra.mxu0 %v138
    %146 = vmatpush.msra.mxu0 %v137
    %147 = vmatpush.msra.mxu0 %v136
    %148 = vmatpush.msra.mxu0 %v135
    %149 = vmatpush.msra.mxu0 %v134
    %150 = vmatpush.msra.mxu0 %v133
    %151 = vmatpush.msra.mxu0 %v132
    %152 = vmatpush.msra.mxu0 %v131
    %153 = vmatpush.msra.mxu0 %v130
    %154 = vmatpush.msra.mxu0 %v129
    %155 = vmatpush.msra.mxu0 %v128
    %156 = vmatpush.msra.mxu0 %v127
    %157 = vmatpush.msra.mxu0 %v126
    %158 = vmatpush.msra.mxu0 %v125
    %159 = vmatpush.msra.mxu0 %v124
    %160 = vmatmul.f32.gmra.mxu0 %v84
    %v161 = vpop.f32.mrf.mxu0
    %v162 = vadd.f32 %v142, %v161
    %163 = vmatmul.f32.gmra.mxu0 %v85
    %v164 = vpop.f32.mrf.mxu0
    %v165 = vadd.f32 %v142, %v164
    %166 = vdwg.mxu0
    %v167 = vperm.slane %v122, 0
    %v168 = vmul.f32 %v162, %v167
    %v169 = vmul.f32 %v165, %v167
    %v170 = vld [vmem:[#allocation7 + $0x10] sm:$0xff]
    %v171 = vld [vmem:[#allocation7 + $0x60] sm:$0xff]
    %v172 = vld [vmem:[#allocation7 + $0xb0] sm:$0xff]
    %v173 = vld [vmem:[#allocation7 + $0x100] sm:$0xff]
    %v174 = vld [vmem:[#allocation7 + $0x150] sm:$0xff]
    %v175 = vld [vmem:[#allocation7 + $0x1a0] sm:$0xff]
    %v176 = vld [vmem:[#allocation7 + $0x1f0] sm:$0xff]
    %v177 = vld [vmem:[#allocation7 + $0x240] sm:$0xff]
    %v178 = vld [vmem:[#allocation7 + $0x290] sm:$0xff]
    %v179 = vld [vmem:[#allocation7 + $0x2e0] sm:$0xff]
    %v180 = vld [vmem:[#allocation7 + $0x330] sm:$0xff]
    %v181 = vld [vmem:[#allocation7 + $0x380] sm:$0xff]
    %v182 = vld [vmem:[#allocation7 + $0x3d0] sm:$0xff]
    %v183 = vld [vmem:[#allocation7 + $0x420] sm:$0xff]
    %v184 = vld [vmem:[#allocation7 + $0x470] sm:$0xff]
    %v185 = vld [vmem:[#allocation7 + $0x4c0] sm:$0xff]
    %186 = vmatpush.msra.mxu0 %v185
    %187 = vmatpush.msra.mxu0 %v184
    %188 = vmatpush.msra.mxu0 %v183
    %189 = vmatpush.msra.mxu0 %v182
    %190 = vmatpush.msra.mxu0 %v181
    %191 = vmatpush.msra.mxu0 %v180
    %192 = vmatpush.msra.mxu0 %v179
    %193 = vmatpush.msra.mxu0 %v178
    %194 = vmatpush.msra.mxu0 %v177
    %195 = vmatpush.msra.mxu0 %v176
    %196 = vmatpush.msra.mxu0 %v175
    %197 = vmatpush.msra.mxu0 %v174
    %198 = vmatpush.msra.mxu0 %v173
    %199 = vmatpush.msra.mxu0 %v172
    %200 = vmatpush.msra.mxu0 %v171
    %201 = vmatpush.msra.mxu0 %v170
    %202 = vmatmul.f32.gmra.mxu0 %v168
    %v203 = vpop.f32.mrf.mxu0
    %v204 = vadd.f32 0.0, %v203
    %205 = vmatmul.f32.gmra.mxu0 %v169
    %v206 = vpop.f32.mrf.mxu0
    %v207 = vadd.f32 0.0, %v206
    %208 = vdwg.mxu0
    %v209 = vmax.f32 %v204, %v207
    %v210 = vrot.slane %v209, 4
    %v211 = vmax.f32 %v209, %v210
    %v212 = vrot.slane %v211, 2
    %v213 = vmax.f32 %v211, %v212
    %v214 = vrot.slane %v213, 1
    %v215 = vmax.f32 %v213, %v214
    %v216 = vlaneseq
    %v217 = vshrl.u32 %v216, 7
    %v218 = vadd.s32 %v217, 8
    %vm219 = vcmp.eq.f32.partialorder %v204, %v215
    %vm220 = vcmp.eq.f32.partialorder %v207, %v215
    %v221 = vsel %vm219, %v217, 16
    %v222 = vsel %vm220, %v218, 16
    %vm223 = vcmp.lt.s32.totalorder %v221, %v222
    %v224 = vsel %vm223, %v221, %v222
    %v225 = vrot.slane %v224, 4
    %vm226 = vcmp.lt.s32.totalorder %v224, %v225
    %v227 = vsel %vm226, %v224, %v225
    %v228 = vrot.slane %v227, 2
    %vm229 = vcmp.lt.s32.totalorder %v227, %v228
    %v230 = vsel %vm229, %v227, %v228
    %v231 = vrot.slane %v230, 1
    %vm232 = vcmp.lt.s32.totalorder %v230, %v231
    %v233 = vsel %vm232, %v230, %v231
    %vm234 = vcmp.eq.s32.totalorder %v217, %v233
    %vm235 = vcmp.eq.s32.totalorder %v218, %v233
    %v236 = vsel %vm234, 1, 0
    %v237 = vsel %vm235, 1, 0
    %v238 = vcvt.s32.f32 %v236
    %v239 = vcvt.s32.f32 %v237
    %v240 = vmul.f32 %v238, %v162
    %v241 = vmul.f32 %v239, %v165
    %v242 = vadd.f32 %v240, %v241
    %v243 = vrot.slane %v242, 4
    %v244 = vadd.f32 %v242, %v243
    %v245 = vrot.slane %v244, 2
    %v246 = vadd.f32 %v244, %v245
    %v247 = vrot.slane %v246, 1
    %v248 = vadd.f32 %v246, %v247
    %v249 = vld [vmem:[#allocation7 + $0x30] sm:$0xff]
    %v250 = vld [vmem:[#allocation7 + $0x38] sm:$0xff]
    %v251 = vld [vmem:[#allocation7 + $0x40] sm:$0xff]
    %v252 = vld [vmem:[#allocation7 + $0x80] sm:$0xff]
    %v253 = vld [vmem:[#allocation7 + $0x88] sm:$0xff]
    %v254 = vld [vmem:[#allocation7 + $0x90] sm:$0xff]
    %v255 = vld [vmem:[#allocation7 + $0xd0] sm:$0xff]
    %v256 = vld [vmem:[#allocation7 + $0xd8] sm:$0xff]
    %v257 = vld [vmem:[#allocation7 + $0xe0] sm:$0xff]
    %v258 = vld [vmem:[#allocation7 + $0x120] sm:$0xff]
    %v259 = vld [vmem:[#allocation7 + $0x128] sm:$0xff]
    %v260 = vld [vmem:[#allocation7 + $0x130] sm:$0xff]
    %v261 = vld [vmem:[#allocation7 + $0x170] sm:$0xff]
    %v262 = vld [vmem:[#allocation7 + $0x178] sm:$0xff]
    %v263 = vld [vmem:[#allocation7 + $0x180] sm:$0xff]
    %v264 = vld [vmem:[#allocation7 + $0x1c0] sm:$0xff]
    %v265 = vld [vmem:[#allocation7 + $0x1c8] sm:$0xff]
    %v266 = vld [vmem:[#allocation7 + $0x1d0] sm:$0xff]
    %v267 = vld [vmem:[#allocation7 + $0x210] sm:$0xff]
    %v268 = vld [vmem:[#allocation7 + $0x218] sm:$0xff]
    %v269 = vld [vmem:[#allocation7 + $0x220] sm:$0xff]
    %v270 = vld [vmem:[#allocation7 + $0x260] sm:$0xff]
    %v271 = vld [vmem:[#allocation7 + $0x268] sm:$0xff]
    %v272 = vld [vmem:[#allocation7 + $0x270] sm:$0xff]
    %v273 = vld [vmem:[#allocation7 + $0x2b0] sm:$0xff]
    %v274 = vld [vmem:[#allocation7 + $0x2b8] sm:$0xff]
    %v275 = vld [vmem:[#allocation7 + $0x2c0] sm:$0xff]
    %v276 = vld [vmem:[#allocation7 + $0x300] sm:$0xff]
    %v277 = vld [vmem:[#allocation7 + $0x308] sm:$0xff]
    %v278 = vld [vmem:[#allocation7 + $0x310] sm:$0xff]
    %v279 = vld [vmem:[#allocation7 + $0x350] sm:$0xff]
    %v280 = vld [vmem:[#allocation7 + $0x358] sm:$0xff]
    %v281 = vld [vmem:[#allocation7 + $0x360] sm:$0xff]
    %v282 = vld [vmem:[#allocation7 + $0x3a0] sm:$0xff]
    %v283 = vld [vmem:[#allocation7 + $0x3a8] sm:$0xff]
    %v284 = vld [vmem:[#allocation7 + $0x3b0] sm:$0xff]
    %v285 = vld [vmem:[#allocation7 + $0x3f0] sm:$0xff]
    %v286 = vld [vmem:[#allocation7 + $0x3f8] sm:$0xff]
    %v287 = vld [vmem:[#allocation7 + $0x400] sm:$0xff]
    %v288 = vld [vmem:[#allocation7 + $0x440] sm:$0xff]
    %v289 = vld [vmem:[#allocation7 + $0x448] sm:$0xff]
    %v290 = vld [vmem:[#allocation7 + $0x450] sm:$0xff]
    %v291 = vld [vmem:[#allocation7 + $0x490] sm:$0xff]
    %v292 = vld [vmem:[#allocation7 + $0x498] sm:$0xff]
    %v293 = vld [vmem:[#allocation7 + $0x4a0] sm:$0xff]
    %v294 = vld [vmem:[#allocation7 + $0x4e0] sm:$0xff]
    %v295 = vld [vmem:[#allocation7 + $0x4e8] sm:$0xff]
    %v296 = vld [vmem:[#allocation7 + $0x4f0] sm:$0xff]
    %v297 = vld [vmem:[#allocation8 + $0x5] sm:$0x7]
    %v299 = vperm.slane %v297, 0
    %v300 = vperm.slane %v297, 1
    %v301 = vperm.slane %v297, 2
    %305 = vmatpush.msra.mxu0 %v294
    %306 = vmatpush.msra.mxu0 %v291
    %307 = vmatpush.msra.mxu0 %v288
    %308 = vmatpush.msra.mxu0 %v285
    %309 = vmatpush.msra.mxu0 %v282
    %310 = vmatpush.msra.mxu0 %v279
    %311 = vmatpush.msra.mxu0 %v276
    %312 = vmatpush.msra.mxu0 %v273
    %313 = vmatpush.msra.mxu0 %v270
    %314 = vmatpush.msra.mxu0 %v267
    %315 = vmatpush.msra.mxu0 %v264
    %316 = vmatpush.msra.mxu0 %v261
    %317 = vmatpush.msra.mxu0 %v258
    %318 = vmatpush.msra.mxu0 %v255
    %319 = vmatpush.msra.mxu0 %v252
    %320 = vmatpush.msra.mxu0 %v249
    %321 = vmatmul.f32.gmra.mxu0 %v248
    %v322 = vpop.f32.mrf.mxu0
    %v323 = vadd.f32 %v299, %v322
    %324 = vdwg.mxu0
    %325 = vmatpush.msra.mxu0 %v295
    %326 = vmatpush.msra.mxu0 %v292
    %327 = vmatpush.msra.mxu0 %v289
    %328 = vmatpush.msra.mxu0 %v286
    %329 = vmatpush.msra.mxu0 %v283
    %330 = vmatpush.msra.mxu0 %v280
    %331 = vmatpush.msra.mxu0 %v277
    %332 = vmatpush.msra.mxu0 %v274
    %333 = vmatpush.msra.mxu0 %v271
    %334 = vmatpush.msra.mxu0 %v268
    %335 = vmatpush.msra.mxu0 %v265
    %336 = vmatpush.msra.mxu0 %v262
    %337 = vmatpush.msra.mxu0 %v259
    %338 = vmatpush.msra.mxu0 %v256
    %339 = vmatpush.msra.mxu0 %v253
    %340 = vmatpush.msra.mxu0 %v250
    %341 = vmatmul.f32.gmra.mxu0 %v248
    %v342 = vpop.f32.mrf.mxu0
    %v343 = vadd.f32 %v300, %v342
    %344 = vdwg.mxu0
    %345 = vmatpush.msra.mxu0 %v296
    %346 = vmatpush.msra.mxu0 %v293
    %347 = vmatpush.msra.mxu0 %v290
    %348 = vmatpush.msra.mxu0 %v287
    %349 = vmatpush.msra.mxu0 %v284
    %350 = vmatpush.msra.mxu0 %v281
    %351 = vmatpush.msra.mxu0 %v278
    %352 = vmatpush.msra.mxu0 %v275
    %353 = vmatpush.msra.mxu0 %v272
    %354 = vmatpush.msra.mxu0 %v269
    %355 = vmatpush.msra.mxu0 %v266
    %356 = vmatpush.msra.mxu0 %v263
    %357 = vmatpush.msra.mxu0 %v260
    %358 = vmatpush.msra.mxu0 %v257
    %359 = vmatpush.msra.mxu0 %v254
    %360 = vmatpush.msra.mxu0 %v251
    %361 = vmatmul.f32.gmra.mxu0 %v248
    %v362 = vpop.f32.mrf.mxu0
    %v363 = vadd.f32 %v301, %v362
    %364 = vdwg.mxu0
    %v365 = vld [vmem:[#allocation7 + $0x18] sm:$0xff]
    %v366 = vld [vmem:[#allocation7 + $0x20] sm:$0xff]
    %v367 = vld [vmem:[#allocation7 + $0x28] sm:$0xff]
    %v368 = vld [vmem:[#allocation7 + $0x68] sm:$0xff]
    %v369 = vld [vmem:[#allocation7 + $0x70] sm:$0xff]
    %v370 = vld [vmem:[#allocation7 + $0x78] sm:$0xff]
    %v371 = vld [vmem:[#allocation7 + $0xb8] sm:$0xff]
    %v372 = vld [vmem:[#allocation7 + $0xc0] sm:$0xff]
    %v373 = vld [vmem:[#allocation7 + $0xc8] sm:$0xff]
    %v374 = vld [vmem:[#allocation7 + $0x108] sm:$0xff]
    %v375 = vld [vmem:[#allocation7 + $0x110] sm:$0xff]
    %v376 = vld [vmem:[#allocation7 + $0x118] sm:$0xff]
    %v377 = vld [vmem:[#allocation7 + $0x158] sm:$0xff]
    %v378 = vld [vmem:[#allocation7 + $0x160] sm:$0xff]
    %v379 = vld [vmem:[#allocation7 + $0x168] sm:$0xff]
    %v380 = vld [vmem:[#allocation7 + $0x1a8] sm:$0xff]
    %v381 = vld [vmem:[#allocation7 + $0x1b0] sm:$0xff]
    %v382 = vld [vmem:[#allocation7 + $0x1b8] sm:$0xff]
    %v383 = vld [vmem:[#allocation7 + $0x1f8] sm:$0xff]
    %v384 = vld [vmem:[#allocation7 + $0x200] sm:$0xff]
    %v385 = vld [vmem:[#allocation7 + $0x208] sm:$0xff]
    %v386 = vld [vmem:[#allocation7 + $0x248] sm:$0xff]
    %v387 = vld [vmem:[#allocation7 + $0x250] sm:$0xff]
    %v388 = vld [vmem:[#allocation7 + $0x258] sm:$0xff]
    %v389 = vld [vmem:[#allocation7 + $0x298] sm:$0xff]
    %v390 = vld [vmem:[#allocation7 + $0x2a0] sm:$0xff]
    %v391 = vld [vmem:[#allocation7 + $0x2a8] sm:$0xff]
    %v392 = vld [vmem:[#allocation7 + $0x2e8] sm:$0xff]
    %v393 = vld [vmem:[#allocation7 + $0x2f0] sm:$0xff]
    %v394 = vld [vmem:[#allocation7 + $0x2f8] sm:$0xff]
    %v395 = vld [vmem:[#allocation7 + $0x338] sm:$0xff]
    %v396 = vld [vmem:[#allocation7 + $0x340] sm:$0xff]
    %v397 = vld [vmem:[#allocation7 + $0x348] sm:$0xff]
    %v398 = vld [vmem:[#allocation7 + $0x388] sm:$0xff]
    %v399 = vld [vmem:[#allocation7 + $0x390] sm:$0xff]
    %v400 = vld [vmem:[#allocation7 + $0x398] sm:$0xff]
    %v401 = vld [vmem:[#allocation7 + $0x3d8] sm:$0xff]
    %v402 = vld [vmem:[#allocation7 + $0x3e0] sm:$0xff]
    %v403 = vld [vmem:[#allocation7 + $0x3e8] sm:$0xff]
    %v404 = vld [vmem:[#allocation7 + $0x428] sm:$0xff]
    %v405 = vld [vmem:[#allocation7 + $0x430] sm:$0xff]
    %v406 = vld [vmem:[#allocation7 + $0x438] sm:$0xff]
    %v407 = vld [vmem:[#allocation7 + $0x478] sm:$0xff]
    %v408 = vld [vmem:[#allocation7 + $0x480] sm:$0xff]
    %v409 = vld [vmem:[#allocation7 + $0x488] sm:$0xff]
    %v410 = vld [vmem:[#allocation7 + $0x4c8] sm:$0xff]
    %v411 = vld [vmem:[#allocation7 + $0x4d0] sm:$0xff]
    %v412 = vld [vmem:[#allocation7 + $0x4d8] sm:$0xff]
    %v413 = vld [vmem:[#allocation8 + $0x2] sm:$0x7]
    %v415 = vperm.slane %v413, 0
    %v416 = vperm.slane %v413, 1
    %v417 = vperm.slane %v413, 2
    %421 = vmatpush.msra.mxu0 %v410
    %422 = vmatpush.msra.mxu0 %v407
    %423 = vmatpush.msra.mxu0 %v404
    %424 = vmatpush.msra.mxu0 %v401
    %425 = vmatpush.msra.mxu0 %v398
    %426 = vmatpush.msra.mxu0 %v395
    %427 = vmatpush.msra.mxu0 %v392
    %428 = vmatpush.msra.mxu0 %v389
    %429 = vmatpush.msra.mxu0 %v386
    %430 = vmatpush.msra.mxu0 %v383
    %431 = vmatpush.msra.mxu0 %v380
    %432 = vmatpush.msra.mxu0 %v377
    %433 = vmatpush.msra.mxu0 %v374
    %434 = vmatpush.msra.mxu0 %v371
    %435 = vmatpush.msra.mxu0 %v368
    %436 = vmatpush.msra.mxu0 %v365
    %437 = vmatmul.f32.gmra.mxu0 %v86
    %v438 = vpop.f32.mrf.mxu0
    %v439 = vadd.f32 %v415, %v438
    %440 = vdwg.mxu0
    %441 = vmatpush.msra.mxu0 %v411
    %442 = vmatpush.msra.mxu0 %v408
    %443 = vmatpush.msra.mxu0 %v405
    %444 = vmatpush.msra.mxu0 %v402
    %445 = vmatpush.msra.mxu0 %v399
    %446 = vmatpush.msra.mxu0 %v396
    %447 = vmatpush.msra.mxu0 %v393
    %448 = vmatpush.msra.mxu0 %v390
    %449 = vmatpush.msra.mxu0 %v387
    %450 = vmatpush.msra.mxu0 %v384
    %451 = vmatpush.msra.mxu0 %v381
    %452 = vmatpush.msra.mxu0 %v378
    %453 = vmatpush.msra.mxu0 %v375
    %454 = vmatpush.msra.mxu0 %v372
    %455 = vmatpush.msra.mxu0 %v369
    %456 = vmatpush.msra.mxu0 %v366
    %457 = vmatmul.f32.gmra.mxu0 %v86
    %v458 = vpop.f32.mrf.mxu0
    %v459 = vadd.f32 %v416, %v458
    %460 = vdwg.mxu0
    %461 = vmatpush.msra.mxu0 %v412
    %462 = vmatpush.msra.mxu0 %v409
    %463 = vmatpush.msra.mxu0 %v406
    %464 = vmatpush.msra.mxu0 %v403
    %465 = vmatpush.msra.mxu0 %v400
    %466 = vmatpush.msra.mxu0 %v397
    %467 = vmatpush.msra.mxu0 %v394
    %468 = vmatpush.msra.mxu0 %v391
    %469 = vmatpush.msra.mxu0 %v388
    %470 = vmatpush.msra.mxu0 %v385
    %471 = vmatpush.msra.mxu0 %v382
    %472 = vmatpush.msra.mxu0 %v379
    %473 = vmatpush.msra.mxu0 %v376
    %474 = vmatpush.msra.mxu0 %v373
    %475 = vmatpush.msra.mxu0 %v370
    %476 = vmatpush.msra.mxu0 %v367
    %477 = vmatmul.f32.gmra.mxu0 %v86
    %v478 = vpop.f32.mrf.mxu0
    %v479 = vadd.f32 %v417, %v478
    %480 = vdwg.mxu0
    %v481 = vadd.f32 %v323, %v439
    %v482 = vxor.u32 %v481, 2147483648
    %v483 = vmul.f32 %v482, 1.442695
    %v484 = vpow.pop %v483
    %v485 = vadd.f32 %v484, 1.0
    %v486 = vrcp.pop %v485
    %v487 = vmul.f32 %v485, %v486
    %v488 = vsub.f32 1.0, %v487
    %v489 = vmul.f32 %v486, %v488
    %v490 = vadd.f32 %v486, %v489
    %vm491 = vweird.f32 %v485
    %vm492 = vweird.f32 %v486
    %vm493 = vmor %vm491, %vm492
    %v494 = vsel %vm493, %v486, %v490
    %v495 = vand.u32 2147483647, %v485
    %vm496 = vcmp.eq.f32.partialorder %v495, 8.507059e+37
    %v497 = vand.u32 %v485, 2147483648
    %v498 = vor.u32 1.1754944e-38, %v497
    %v499 = vsel %vm496, %v498, %v494
    %v500 = vmul.f32 1.0, %v499
    %v501 = vadd.f32 %v343, %v459
    %v502 = vxor.u32 %v501, 2147483648
    %v503 = vmul.f32 %v502, 1.442695
    %v504 = vpow.pop %v503
    %v505 = vadd.f32 %v504, 1.0
    %v506 = vrcp.pop %v505
    %v507 = vmul.f32 %v505, %v506
    %v508 = vsub.f32 1.0, %v507
    %v509 = vmul.f32 %v506, %v508
    %v510 = vadd.f32 %v506, %v509
    %vm511 = vweird.f32 %v505
    %vm512 = vweird.f32 %v506
    %vm513 = vmor %vm511, %vm512
    %v514 = vsel %vm513, %v506, %v510
    %v515 = vand.u32 2147483647, %v505
    %vm516 = vcmp.eq.f32.partialorder %v515, 8.507059e+37
    %v517 = vand.u32 %v505, 2147483648
    %v518 = vor.u32 1.1754944e-38, %v517
    %v519 = vsel %vm516, %v518, %v514
    %v520 = vmul.f32 1.0, %v519
    %v521 = vmul.f32 %v500, %v479
    %v522 = vadd.f32 %v363, %v521
    %v523 = vtanh.pop %v522
    %v524 = vsub.f32 1.0, %v520
    %v525 = vmul.f32 %v524, %v523
    %v526 = vmul.f32 %v520, %v86
    %v527 = vadd.f32 %v525, %v526
    %528 = vst [vmem:[#allocation11] sm:$0x1] %v527
    %v529 = vld [vmem:[#allocation7 + $0x48] sm:$0xff]
    %v530 = vld [vmem:[#allocation7 + $0x98] sm:$0xff]
    %v531 = vld [vmem:[#allocation7 + $0xe8] sm:$0xff]
    %v532 = vld [vmem:[#allocation7 + $0x138] sm:$0xff]
    %v533 = vld [vmem:[#allocation7 + $0x188] sm:$0xff]
    %v534 = vld [vmem:[#allocation7 + $0x1d8] sm:$0xff]
    %v535 = vld [vmem:[#allocation7 + $0x228] sm:$0xff]
    %v536 = vld [vmem:[#allocation7 + $0x278] sm:$0xff]
    %v537 = vld [vmem:[#allocation7 + $0x2c8] sm:$0xff]
    %v538 = vld [vmem:[#allocation7 + $0x318] sm:$0xff]
    %v539 = vld [vmem:[#allocation7 + $0x368] sm:$0xff]
    %v540 = vld [vmem:[#allocation7 + $0x3b8] sm:$0xff]
    %v541 = vld [vmem:[#allocation7 + $0x408] sm:$0xff]
    %v542 = vld [vmem:[#allocation7 + $0x458] sm:$0xff]
    %v543 = vld [vmem:[#allocation7 + $0x4a8] sm:$0xff]
    %v544 = vld [vmem:[#allocation7 + $0x4f8] sm:$0xff]
    %v545 = vld [vmem:[#allocation8 + $0x8] sm:$0x1]
    %546 = vmatpush.msra.mxu0 %v544
    %547 = vmatpush.msra.mxu0 %v543
    %548 = vmatpush.msra.mxu0 %v542
    %549 = vmatpush.msra.mxu0 %v541
    %550 = vmatpush.msra.mxu0 %v540
    %551 = vmatpush.msra.mxu0 %v539
    %552 = vmatpush.msra.mxu0 %v538
    %553 = vmatpush.msra.mxu0 %v537
    %554 = vmatpush.msra.mxu0 %v536
    %555 = vmatpush.msra.mxu0 %v535
    %556 = vmatpush.msra.mxu0 %v534
    %557 = vmatpush.msra.mxu0 %v533
    %558 = vmatpush.msra.mxu0 %v532
    %559 = vmatpush.msra.mxu0 %v531
    %560 = vmatpush.msra.mxu0 %v530
    %561 = vmatpush.msra.mxu0 %v529
    %562 = vmatmul.f32.gmra.mxu0 %v527
    %v563 = vpop.f32.mrf.mxu0
    %v564 = vadd.f32 %v545, %v563
    %565 = vdwg.mxu0
    %vm566 = vcmask 1040384
    %v567 = vsel %vm566, %v564, -inf
    %568 = vmax.xlane.f32.xlu0 %v567
    %v569 = vpop.xlane.xlu0 %568
    %v570 = vsub.f32 %v564, %v569
    %v571 = vmul.f32 %v570, 1.442695
    %v572 = vpow.pop %v571
    %v573 = vsel %vm566, %v572, 0.0
    %574 = vadd.xlane.f32.xlu0 %v573
    %v575 = vpop.xlane.xlu0 %574
    %v576 = vrcp.pop %v575
    %v577 = vmul.f32 %v572, %v576
    %578 = vst [vmem:[#allocation10] sm:$0x1] %v577
    // Predicated region
    $region38: #{tpu_custom_call.1} parent=1 // pred_check
      _
    $region39: #{tpu_custom_call.1} parent=1 // pred_check_branch
      %580 = sbr.rel (0) target = $region41
    $region40: #{tpu_custom_call.1} parent=1 // pred_region
      %582 = vsyncadd [#allocation4], 0
      %s584 = sshll.u32 [#allocation10], 4
      %s585 = int_to_ptr.vmem [resolvable:$true] %s584
      %s586 = sshll.u32 %s5, 4
      %s587 = int_to_ptr.hbm [resolvable:$true] %s586
      %589 = dma.vmem_to_hbm [thread:$0]  %s585, 16, %s587, [#allocation4]
    $region41: #{tpu_custom_call.1} parent=1 // pred_fallthru
      _
    // Predicated region
    $region42: #{tpu_custom_call.1} parent=1 // pred_check
      _
    $region43: #{tpu_custom_call.1} parent=1 // pred_check_branch
      %591 = sbr.rel (0) target = $region45
    $region44: #{tpu_custom_call.1} parent=1 // pred_region
      %593 = vsyncadd [#allocation12], 0
      %s595 = sshll.u32 [#allocation11], 4
      %s596 = int_to_ptr.vmem [resolvable:$true] %s595
      %s597 = sshll.u32 %s6, 4
      %s598 = int_to_ptr.hbm [resolvable:$true] %s597
      %600 = dma.vmem_to_hbm [thread:$0]  %s596, 16, %s598, [#allocation12]
    $region45: #{tpu_custom_call.1} parent=1 // pred_fallthru
      _
    // Predicated region
    $region46: #{tpu_custom_call.1} parent=1 // pred_check
      _
    $region47: #{tpu_custom_call.1} parent=1 // pred_check_branch
      %602 = sbr.rel (0) target = $region49
    $region48: #{tpu_custom_call.1} parent=1 // pred_region
      %604 = dma.done [#allocation4], 16
    $region49: #{tpu_custom_call.1} parent=1 // pred_fallthru
      _
    // Predicated region
    $region50: #{tpu_custom_call.1} parent=1 // pred_check
      _
    $region51: #{tpu_custom_call.1} parent=1 // pred_check_branch
      %606 = sbr.rel (0) target = $region53
    $region52: #{tpu_custom_call.1} parent=1 // pred_region
      %608 = dma.done [#allocation12], 16
    $region53: #{tpu_custom_call.1} parent=1 // pred_fallthru
      _
    %609 = vsyncpa [#allocation3], 1
    %610 = vsyncpa [#allocation6], 1
    %611 = vsyncpa [#allocation9], 1
    %612 = vsyncpa [#allocation4], 1
    %613 = vsyncpa [#allocation12], 1

</llo_original>
